<compile_context>
chip_gen: v7x
topology: tpu7x:2x2x1
jax: 0.10.0
libtpu: 0.0.40
codegen_flags: <defaults>
</compile_context>

<pallas_src>
import functools
from math import sqrt

import jax
import jax.numpy as jnp
from jax.experimental import pallas as pl
from jax.experimental.pallas import tpu as pltpu


# ---------------------------------------------------------------------------
# Kernel
# ---------------------------------------------------------------------------
def ffnglu_kernel(x_ref, gp_ref, wo_ref, gamma_ref, beta_ref,
                  o_ref, acc_ref, *, alpha, eps):
    # Per (token-tile i, 4H-chunk k) grid step:
    #   x_ref:     (TM, H)      compute dtype (bf16), resident over k
    #   gp_ref:    (H, 2*TK)    packed [Wg_k | Wp_k] chunk (pre-transposed)
    #   wo_ref:    (TK, H)      post_ffn weight chunk      (pre-transposed)
    #   gamma_ref: (1, H)       LayerNorm scale (f32)
    #   beta_ref:  (1, H)       LayerNorm bias  (f32)
    #   o_ref:     (TM, H)      output tile
    #   acc_ref:   (TM, H)      f32 accumulator for postx
    k = pl.program_id(1)
    tk = gp_ref.shape[1] // 2

    @pl.when(k == 0)
    def _():
        acc_ref[...] = jnp.zeros_like(acc_ref)

    x = x_ref[...]                                             # (TM, H) bf16

    # Single fused MXU pass for gate and pre: (TM, H) @ (H, 2*TK).
    gp = jnp.dot(x, gp_ref[...], preferred_element_type=jnp.float32)
    gate = jnp.maximum(gp[:, :tk], 0.0)                        # ReLU gate
    pre = gp[:, tk:]
    hidden = (gate * pre).astype(wo_ref.dtype)                 # (TM, TK) bf16

    acc_ref[...] += jnp.dot(hidden, wo_ref[...],
                            preferred_element_type=jnp.float32)

    @pl.when(k == pl.num_programs(1) - 1)
    def _():
        y = x.astype(jnp.float32) * alpha + acc_ref[...]       # DeepNorm pre-LN
        mean = jnp.mean(y, axis=-1, keepdims=True)
        centered = y - mean
        var = jnp.mean(centered * centered, axis=-1, keepdims=True)
        normed = centered * jax.lax.rsqrt(var + eps)           # EUP rsqrt
        out = (normed * gamma_ref[...].astype(jnp.float32)
               + beta_ref[...].astype(jnp.float32))
        o_ref[...] = out.astype(o_ref.dtype)


# ---------------------------------------------------------------------------
# Tiling / VMEM budgeting helpers
# ---------------------------------------------------------------------------
def _round_up(x, m):
    return ((x + m - 1) // m) * m


def _vmem_capacity_bytes():
    """Physical VMEM per core, with conservative fallbacks."""
    try:
        cap = int(getattr(pltpu.get_tpu_info(), "vmem_capacity_bytes", 0))
        if cap > 0:
            return cap
    except Exception:
        pass
    try:
        kind = jax.devices()[0].device_kind.lower()
        if "v5" in kind or "v6" in kind:
            return 128 << 20
    except Exception:
        pass
    return 64 << 20   # conservative (v7x-class)


def _vmem_bytes_estimate(tm, tk, h, act_itemsize, out_itemsize):
    dbl = 2  # double-buffered pipeline stages
    x_b = dbl * tm * h * act_itemsize                 # x tile
    gp_b = dbl * h * (2 * tk) * act_itemsize          # packed [Wg|Wp] chunk
    wo_b = dbl * tk * h * act_itemsize                # Wo chunk
    o_b = dbl * tm * h * out_itemsize                 # output tile
    acc_b = tm * h * 4                                # f32 accumulator
    tmp_b = 4 * tm * tk * 4                           # gate/pre/hidden/gp f32 temps
    ln_b = dbl * 2 * h * 4                            # gamma/beta
    return x_b + gp_b + wo_b + o_b + acc_b + tmp_b + ln_b


def _pick_tk(h4, prefer=512):
    """Largest TK <= prefer dividing 4H, preferring 256-multiples (MXU width
    on v6e/v7x), then 128-multiples; falls back to the full extent."""
    for align in (256, 128):
        t = min((prefer // align) * align, (h4 // align) * align)
        while t >= align:
            if h4 % t == 0:
                return t
            t -= align
    return h4


def _select_tiles(tokens, h, h4, act_itemsize, out_itemsize, tm, tk):
    vmem_cap = _vmem_capacity_bytes()
    # Headroom-aware usable cap: never request all of physical VMEM.
    if vmem_cap <= (80 << 20):                 # v7x-class (64 MiB physical)
        cap_usable = vmem_cap - (12 << 20)     # ~52 MiB
    else:                                      # v5e / v6e (128 MiB physical)
        cap_usable = vmem_cap - (24 << 20)     # ~104 MiB
    cap_for_tiles = cap_usable - (6 << 20)     # compiler-internal scratch margin

    if tm is None:
        # Large, 128-aligned token tile (arithmetic intensity ~ TM flops/byte
        # w.r.t. streamed weight bytes); small inputs use the full padded extent.
        tm = 512 if tokens >= 512 else max(16, _round_up(tokens, 16))
    tokens_padded = _round_up(tokens, tm)

    if tk is None:
        # Weight-resident fast path: whole weight set lives in VMEM, DMA'd once.
        if _vmem_bytes_estimate(tm, h4, h, act_itemsize, out_itemsize) <= cap_for_tiles:
            tk = h4
        else:
            tk = _pick_tk(h4, prefer=512)
    else:
        assert h4 % tk == 0 and (tk % 128 == 0 or tk == h4), \
            "tk must divide 4H and be a multiple of 128 (or equal 4H)"

    # Shrink TK first (keeps MXU fed), then TM, until the footprint fits.
    while _vmem_bytes_estimate(tm, tk, h, act_itemsize, out_itemsize) > cap_for_tiles:
        if tk >= 512 and (tk // 2) % 128 == 0 and h4 % (tk // 2) == 0:
            tk //= 2
        elif tm > 128:
            tm //= 2
            tokens_padded = _round_up(tokens, tm)
        else:
            break

    # Keep >=2 token tiles so "parallel" can shard across v7x's two TensorCores.
    if tokens_padded // tm == 1 and tm >= 512:
        tm //= 2
        tokens_padded = _round_up(tokens, tm)

    est = _vmem_bytes_estimate(tm, tk, h, act_itemsize, out_itemsize)
    vmem_limit = int(min(max(est + (8 << 20), 32 << 20), cap_usable))
    return tm, tk, tokens_padded, vmem_limit


def _pack_gate_pre(wg_t, wp_t, tk):
    """Pack pre-transposed Wg/Wp ([H, 4H] each) into one [H, 2*4H] array whose
    chunk k along the lane axis is [Wg_k | Wp_k] of width 2*TK."""
    h, h4 = wg_t.shape
    nk = h4 // tk
    wg_r = wg_t.reshape(h, nk, tk)
    wp_r = wp_t.reshape(h, nk, tk)
    return jnp.concatenate([wg_r, wp_r], axis=2).reshape(h, nk * 2 * tk)


# ---------------------------------------------------------------------------
# Wrapper
# ---------------------------------------------------------------------------
def ffnglu_forward(x, wg_t, wp_t, wo_t, gamma, beta, *, alpha, eps=1e-5,
                   compute_dtype=jnp.bfloat16, tm=None, tk=None, out_dtype=None):
    """x: [B, S, H]; wg_t, wp_t: [H, 4H] (pre-transposed); wo_t: [4H, H];
    gamma, beta: [H]."""
    B, S, H = x.shape
    H4 = wg_t.shape[1]
    tokens = B * S
    out_dtype = x.dtype if out_dtype is None else out_dtype

    act_isz = jnp.dtype(compute_dtype).itemsize
    out_isz = jnp.dtype(out_dtype).itemsize
    tm, tk, tokens_padded, vmem_limit = _select_tiles(
        tokens, H, H4, act_isz, out_isz, tm, tk)

    x2 = x.reshape(tokens, H).astype(compute_dtype)
    if tokens_padded != tokens:
        x2 = jnp.pad(x2, ((0, tokens_padded - tokens), (0, 0)))

    gp_c = _pack_gate_pre(wg_t.astype(compute_dtype),
                          wp_t.astype(compute_dtype), tk)   # [H, 2*4H]
    wo_c = wo_t.astype(compute_dtype)                        # [4H, H]
    gamma2 = gamma.reshape(1, H).astype(jnp.float32)
    beta2 = beta.reshape(1, H).astype(jnp.float32)

    kernel = functools.partial(ffnglu_kernel, alpha=alpha, eps=eps)
    grid = (tokens_padded // tm, H4 // tk)

    out = pl.pallas_call(
        kernel,
        out_shape=jax.ShapeDtypeStruct((tokens_padded, H), out_dtype),
        grid_spec=pltpu.PrefetchScalarGridSpec(
            num_scalar_prefetch=0,
            grid=grid,
            in_specs=[
                pl.BlockSpec((tm, H), lambda i, k: (i, 0)),      # x: resident over k
                pl.BlockSpec((H, 2 * tk), lambda i, k: (0, k)),  # [Wg_k | Wp_k]
                pl.BlockSpec((tk, H), lambda i, k: (k, 0)),      # Wo chunk
                pl.BlockSpec((1, H), lambda i, k: (0, 0)),       # LN gamma
                pl.BlockSpec((1, H), lambda i, k: (0, 0)),       # LN beta
            ],
            out_specs=pl.BlockSpec((tm, H), lambda i, k: (i, 0)),
            scratch_shapes=[pltpu.VMEM((tm, H), jnp.float32)],
        ),
        compiler_params=pltpu.CompilerParams(
            dimension_semantics=("parallel", "arbitrary"),
            vmem_limit_bytes=vmem_limit),
    )(x2, gp_c, wo_c, gamma2, beta2)

    if tokens_padded != tokens:
        out = out[:tokens]
    return out.reshape(B, S, H)


# ---------------------------------------------------------------------------
# Reference + init helpers
# ---------------------------------------------------------------------------
def xavier_normal(key, out_features, in_features, gain):
    std = gain * sqrt(2.0 / (in_features + out_features))
    return std * jax.random.normal(key, (out_features, in_features), jnp.float32)


def reference_forward(x, wg, wp, wo, gamma, beta, *, alpha, eps=1e-5,
                      compute_dtype=jnp.bfloat16):
    """Pure-JAX reference mirroring kernel numerics (bf16 operands, f32 acc)."""
    xc = x.astype(compute_dtype)
    gate = jnp.maximum(
        jnp.einsum('bsh,oh->bso', xc, wg.astype(compute_dtype),
                   preferred_element_type=jnp.float32), 0.0)
    pre = jnp.einsum('bsh,oh->bso', xc, wp.astype(compute_dtype),
                     preferred_element_type=jnp.float32)
    hidden = (gate * pre).astype(compute_dtype)
    postx = jnp.einsum('bso,ho->bsh', hidden, wo.astype(compute_dtype),
                       preferred_element_type=jnp.float32)
    y = xc.astype(jnp.float32) * alpha + postx
    mean = jnp.mean(y, axis=-1, keepdims=True)
    var = jnp.mean((y - mean) ** 2, axis=-1, keepdims=True)
    out = (y - mean) * jax.lax.rsqrt(var + eps) * gamma + beta
    return out.astype(x.dtype)


if __name__ == "__main__":
    # Small but representative: H multiple of 128 (lane-dense), S=7 so the
    # token count (14) exercises the pad-to-TM-and-slice path.
    B, S, H = 2, 7, 128
    H4 = 4 * H
    alpha = 1.5
    beta_gain = 0.75
    dropout_rate = 0.1           # unused at inference (identity)

    key = jax.random.PRNGKey(0)
    kx, kg, kp, ko = jax.random.split(key, 4)

    x = jax.random.normal(kx, (B, S, H), jnp.float32)
    wg = xavier_normal(kg, H4, H, beta_gain)    # pre_ffn_gate[0].weight  [4H, H]
    wp = xavier_normal(kp, H4, H, beta_gain)    # pre_ffn.weight          [4H, H]
    wo = xavier_normal(ko, H, H4, beta_gain)    # post_ffn.weight         [H, 4H]
    gamma = jnp.ones((H,), jnp.float32)         # LayerNorm weight
    ln_beta = jnp.zeros((H,), jnp.float32)      # LayerNorm bias

    # Transpose once at "init" — hoisted out of the per-call path.
    wg_t, wp_t, wo_t = wg.T, wp.T, wo.T

    ref = reference_forward(x, wg, wp, wo, gamma, ln_beta, alpha=alpha)

    # 1) Default auto-tiling: weight-resident fast path (tk = 4H, single chunk).
    out_auto = ffnglu_forward(x, wg_t, wp_t, wo_t, gamma, ln_beta, alpha=alpha)
    out_auto = jax.block_until_ready(out_auto)
    assert out_auto.shape == (B, S, H)
    err_auto = float(jnp.max(jnp.abs(out_auto - ref)))
    assert jnp.allclose(out_auto, ref, atol=5e-3, rtol=5e-3), (
        f"auto-tiled mismatch vs reference, max abs err {err_auto}")

    # 2) Forced small tiles: exercises the real (2, 4) grid with accumulation
    #    across the 4H axis, the pl.when epilogue and the token-padding path.
    out_tiled = ffnglu_forward(x, wg_t, wp_t, wo_t, gamma, ln_beta,
                               alpha=alpha, tm=8, tk=128)
    out_tiled = jax.block_until_ready(out_tiled)
    err_tiled = float(jnp.max(jnp.abs(out_tiled - ref)))
    assert jnp.allclose(out_tiled, ref, atol=5e-3, rtol=5e-3), (
        f"tiled mismatch vs reference, max abs err {err_tiled}")

    print("KERNEL_OK")
</pallas_src>

<mosaic_0001>
module attributes {stable_mosaic.version = 11 : i64} {
  func.func @ffnglu_kernel(%arg0: i32, %arg1: i32, %arg2: memref<16x128xbf16, #tpu.memory_space<vmem>>, %arg3: memref<128x1024xbf16, #tpu.memory_space<vmem>>, %arg4: memref<512x128xbf16, #tpu.memory_space<vmem>>, %arg5: memref<1x128xf32, #tpu.memory_space<vmem>>, %arg6: memref<1x128xf32, #tpu.memory_space<vmem>>, %arg7: memref<16x128xf32, #tpu.memory_space<vmem>>, %arg8: memref<16x128xf32, #tpu.memory_space<vmem>>) attributes {dimension_semantics = [#tpu.dimension_semantics<parallel>, #tpu.dimension_semantics<arbitrary>], iteration_bounds = array<i64: 1, 1>, scalar_prefetch = 0 : i64, scratch_operands = 1 : i64, tpu.core_type = #tpu.core_type<tc>, window_params = [{transform_indices = @transform_0, window_bounds = array<i64: 16, 128>}, {transform_indices = @transform_1, window_bounds = array<i64: 128, 1024>}, {transform_indices = @transform_2, window_bounds = array<i64: 512, 128>}, {pipeline_mode = #tpu.pipeline_mode<synchronous>, transform_indices = @transform_3, window_bounds = array<i64: 1, 128>}, {pipeline_mode = #tpu.pipeline_mode<synchronous>, transform_indices = @transform_4, window_bounds = array<i64: 1, 128>}, {transform_indices = @transform_5, window_bounds = array<i64: 16, 128>}]} {
    %c0_i32 = arith.constant 0 : i32
    %0 = arith.cmpi eq, %arg1, %c0_i32 : i32
    %1 = arith.extui %0 : i1 to i32
    %c0_i32_0 = arith.constant 0 : i32
    %2 = arith.cmpi ne, %1, %c0_i32_0 : i32
    scf.if %2 {
      %cst_14 = arith.constant 0.000000e+00 : f32
      %20 = vector.broadcast %cst_14 : f32 to vector<16x128xf32>
      %c0_15 = arith.constant 0 : index
      %c0_16 = arith.constant 0 : index
      %21 = vector.load %arg8[%c0_15, %c0_16] : memref<16x128xf32, #tpu.memory_space<vmem>>, vector<16x128xf32>
      tpu.vector_store %arg8[%c0_15, %c0_16], %20 {strides = array<i32>} : memref<16x128xf32, #tpu.memory_space<vmem>>, vector<16x128xf32>,
    } else {
    }
    %c0 = arith.constant 0 : index
    %c0_1 = arith.constant 0 : index
    %3 = vector.load %arg2[%c0, %c0_1] : memref<16x128xbf16, #tpu.memory_space<vmem>>, vector<16x128xbf16>
    %c0_2 = arith.constant 0 : index
    %c0_3 = arith.constant 0 : index
    %4 = vector.load %arg3[%c0_2, %c0_3] : memref<128x1024xbf16, #tpu.memory_space<vmem>>, vector<128x1024xbf16>
    %cst = arith.constant dense<0.000000e+00> : vector<16x1024xf32>
    %5 = tpu.matmul %3, %4, %cst {dimension_numbers = #tpu.dot_dimension_numbers<[1], [0], [0], [1], [0, 0, 1, 1], [], []>} : vector<16x128xbf16>, vector<128x1024xbf16>, vector<16x1024xf32> -> vector<16x1024xf32>
    %6 = vector.extract_strided_slice %5 {offsets = [0, 0], sizes = [16, 512], strides = [1, 1]} : vector<16x1024xf32> to vector<16x512xf32>
    %cst_4 = arith.constant 0.000000e+00 : f32
    %7 = vector.broadcast %cst_4 : f32 to vector<16x512xf32>
    %8 = arith.maximumf %6, %7 : vector<16x512xf32>
    %9 = vector.extract_strided_slice %5 {offsets = [0, 512], sizes = [16, 512], strides = [1, 1]} : vector<16x1024xf32> to vector<16x512xf32>
    %10 = arith.mulf %8, %9 : vector<16x512xf32>
    %11 = arith.truncf %10 : vector<16x512xf32> to vector<16x512xbf16>
    %c0_5 = arith.constant 0 : index
    %c0_6 = arith.constant 0 : index
    %12 = vector.load %arg8[%c0_5, %c0_6] : memref<16x128xf32, #tpu.memory_space<vmem>>, vector<16x128xf32>
    %c0_7 = arith.constant 0 : index
    %c0_8 = arith.constant 0 : index
    %13 = vector.load %arg4[%c0_7, %c0_8] : memref<512x128xbf16, #tpu.memory_space<vmem>>, vector<512x128xbf16>
    %cst_9 = arith.constant dense<0.000000e+00> : vector<16x128xf32>
    %14 = tpu.matmul %11, %13, %cst_9 {dimension_numbers = #tpu.dot_dimension_numbers<[1], [0], [0], [1], [0, 0, 1, 1], [], []>} : vector<16x512xbf16>, vector<512x128xbf16>, vector<16x128xf32> -> vector<16x128xf32>
    %15 = arith.addf %12, %14 : vector<16x128xf32>
    %c0_10 = arith.constant 0 : index
    %c0_11 = arith.constant 0 : index
    %16 = vector.load %arg8[%c0_10, %c0_11] : memref<16x128xf32, #tpu.memory_space<vmem>>, vector<16x128xf32>
    tpu.vector_store %arg8[%c0_10, %c0_11], %15 {strides = array<i32>} : memref<16x128xf32, #tpu.memory_space<vmem>>, vector<16x128xf32>,
    %c0_i32_12 = arith.constant 0 : i32
    %17 = arith.cmpi eq, %arg1, %c0_i32_12 : i32
    %18 = arith.extui %17 : i1 to i32
    %c0_i32_13 = arith.constant 0 : i32
    %19 = arith.cmpi ne, %18, %c0_i32_13 : i32
    scf.if %19 {
      %20 = arith.extf %3 : vector<16x128xbf16> to vector<16x128xf32>
      %cst_14 = arith.constant 1.500000e+00 : f32
      %21 = vector.broadcast %cst_14 : f32 to vector<16x128xf32>
      %22 = arith.mulf %20, %21 : vector<16x128xf32>
      %c0_15 = arith.constant 0 : index
      %c0_16 = arith.constant 0 : index
      %23 = vector.load %arg8[%c0_15, %c0_16] : memref<16x128xf32, #tpu.memory_space<vmem>>, vector<16x128xf32>
      %24 = arith.addf %22, %23 : vector<16x128xf32>
      %cst_17 = arith.constant dense<0.000000e+00> : vector<16xf32>
      %25 = vector.multi_reduction <add>, %24, %cst_17 [1] : vector<16x128xf32> to vector<16xf32>
      %26 = vector.shape_cast %25 : vector<16xf32> to vector<16x1xf32>
      %cst_18 = arith.constant 1.280000e+02 : f32
      %27 = vector.broadcast %cst_18 : f32 to vector<16x1xf32>
      %28 = arith.divf %26, %27 : vector<16x1xf32>
      %29 = vector.broadcast %28 : vector<16x1xf32> to vector<16x128xf32>
      %30 = arith.subf %24, %29 : vector<16x128xf32>
      %31 = arith.mulf %30, %30 : vector<16x128xf32>
      %cst_19 = arith.constant dense<0.000000e+00> : vector<16xf32>
      %32 = vector.multi_reduction <add>, %31, %cst_19 [1] : vector<16x128xf32> to vector<16xf32>
      %33 = vector.shape_cast %32 : vector<16xf32> to vector<16x1xf32>
      %cst_20 = arith.constant 1.280000e+02 : f32
      %34 = vector.broadcast %cst_20 : f32 to vector<16x1xf32>
      %35 = arith.divf %33, %34 : vector<16x1xf32>
      %cst_21 = arith.constant 9.99999974E-6 : f32
      %36 = vector.broadcast %cst_21 : f32 to vector<16x1xf32>
      %37 = arith.addf %35, %36 : vector<16x1xf32>
      %38 = math.rsqrt %37 : vector<16x1xf32>
      %39 = vector.broadcast %38 : vector<16x1xf32> to vector<16x128xf32>
      %40 = arith.mulf %30, %39 : vector<16x128xf32>
      %c0_22 = arith.constant 0 : index
      %c0_23 = arith.constant 0 : index
      %41 = vector.load %arg5[%c0_22, %c0_23] : memref<1x128xf32, #tpu.memory_space<vmem>>, vector<1x128xf32>
      %42 = vector.broadcast %41 : vector<1x128xf32> to vector<16x128xf32>
      %43 = arith.mulf %40, %42 : vector<16x128xf32>
      %c0_24 = arith.constant 0 : index
      %c0_25 = arith.constant 0 : index
      %44 = vector.load %arg6[%c0_24, %c0_25] : memref<1x128xf32, #tpu.memory_space<vmem>>, vector<1x128xf32>
      %45 = vector.broadcast %44 : vector<1x128xf32> to vector<16x128xf32>
      %46 = arith.addf %43, %45 : vector<16x128xf32>
      %c0_26 = arith.constant 0 : index
      %c0_27 = arith.constant 0 : index
      %47 = vector.load %arg7[%c0_26, %c0_27] : memref<16x128xf32, #tpu.memory_space<vmem>>, vector<16x128xf32>
      tpu.vector_store %arg7[%c0_26, %c0_27], %46 {strides = array<i32>} : memref<16x128xf32, #tpu.memory_space<vmem>>, vector<16x128xf32>,
    } else {
    }
    return
  }
  func.func @transform_0(%arg0: i32, %arg1: i32) -> (i32, i32) {
    %c0_i32 = arith.constant 0 : i32
    %c0_i32_0 = arith.constant 0 : i32
    return %arg0, %c0_i32 : i32, i32
  }
  func.func @transform_1(%arg0: i32, %arg1: i32) -> (i32, i32) {
    %c0_i32 = arith.constant 0 : i32
    %c0_i32_0 = arith.constant 0 : i32
    return %c0_i32, %arg1 : i32, i32
  }
  func.func @transform_2(%arg0: i32, %arg1: i32) -> (i32, i32) {
    %c0_i32 = arith.constant 0 : i32
    %c0_i32_0 = arith.constant 0 : i32
    return %arg1, %c0_i32 : i32, i32
  }
  func.func @transform_3(%arg0: i32, %arg1: i32) -> (i32, i32) {
    %c0_i32 = arith.constant 0 : i32
    %c0_i32_0 = arith.constant 0 : i32
    %c0_i32_1 = arith.constant 0 : i32
    return %c0_i32, %c0_i32_0 : i32, i32
  }
  func.func @transform_4(%arg0: i32, %arg1: i32) -> (i32, i32) {
    %c0_i32 = arith.constant 0 : i32
    %c0_i32_0 = arith.constant 0 : i32
    %c0_i32_1 = arith.constant 0 : i32
    return %c0_i32, %c0_i32_0 : i32, i32
  }
  func.func @transform_5(%arg0: i32, %arg1: i32) -> (i32, i32) {
    %c0_i32 = arith.constant 0 : i32
    %c0_i32_0 = arith.constant 0 : i32
    return %arg0, %c0_i32 : i32, i32
  }
}

</mosaic_0001>

<llo_original>
// kernel: tpu_custom_call.1
$region0: #{tpu_custom_call.1}
  #allocation0 [shape = 'u32[]', space=smem, size = 0x4, offset = 0x4, fixed_abs, tag = 'smem constant byte address 0x4 - core index']
  #allocation1 [shape = 'u32[144,128]{1,0:T(1,128)}', space=vmem, size = 0x12000, scoped, tag = 'internal scratch']
  #allocation2 [shape = 'f32[16,128]{1,0:T(8,128)}', space=vmem, size = 0x2000, scoped, tag = 'scratch operand']
  %s0 = inlined_call_operand.hbm [shape: bf16[16,128], index: 0, kind: input, shape index: {}]
  %s1 = inlined_call_operand.hbm [shape: bf16[128,1024], index: 1, kind: input, shape index: {}]
  %s2 = inlined_call_operand.hbm [shape: bf16[512,128], index: 2, kind: input, shape index: {}]
  %s3 = inlined_call_operand.vmem [shape: f32[1,128], index: 3, kind: input, shape index: {}]
  %s4 = inlined_call_operand.vmem [shape: f32[1,128], index: 4, kind: input, shape index: {}]
  %s5 = inlined_call_operand.hbm [shape: f32[16,128], index: 5, kind: output, shape index: {}]
  %s6 = sld [smem:[#allocation0]]
  $region50: #{tpu_custom_call.1} parent=0
    _
  %s8 = ssub.s32 1, %s6
  %s9 = scalar_select 0, %s8, %s6
  $region1: #{tpu_custom_call.1} parent=0
    #allocation3 [shape = 'u8[4096]{0}', space=vmem, size = 0x1000, scoped, tag = 'input window, operand 0, single buffered']
    #allocation4 [shape = 's32[1]{0}', space=sflag, size = 0x4, scoped, tag = 'scoped memory for tpu_custom_call.1']
    #allocation5 [shape = 's32[1]{0}', space=sflag, size = 0x4, scoped, tag = 'scoped memory for tpu_custom_call.1']
    #allocation6 [shape = 'u8[262144]{0}', space=vmem, size = 0x40000, scoped, tag = 'input window, operand 1, single buffered']
    #allocation7 [shape = 's32[1]{0}', space=sflag, size = 0x4, scoped, tag = 'scoped memory for tpu_custom_call.1']
    #allocation8 [shape = 'u8[131072]{0}', space=vmem, size = 0x20000, scoped, tag = 'input window, operand 2, single buffered']
    #allocation9 [shape = 'u8[8192]{0}', space=vmem, size = 0x2000, scoped, tag = 'output window, operand 0, single buffered']
    %10 = vsyncpa [#allocation4], 0
    %11 = vsyncpa [#allocation7], 0
    %12 = vsyncpa [#allocation5], 0
    // Predicated region
    $region2: #{tpu_custom_call.1} parent=1 // pred_check
      _
    $region3: #{tpu_custom_call.1} parent=1 // pred_check_branch
      %14 = sbr.rel (0) target = $region5
    $region4: #{tpu_custom_call.1} parent=1 // pred_region
      %s16 = ssub.s32 128, 128
      %17 = vsyncadd [#allocation4], %s16
      %s18 = sshll.u32 [#allocation3], 4
      %s19 = int_to_ptr.vmem [resolvable:$true] %s18
      %24 = dma.hbm_to_vmem [thread:$0]  %s0, 128, %s19, [#allocation4], 64, 64, 4
    $region5: #{tpu_custom_call.1} parent=1 // pred_fallthru
      _
    // Predicated region
    $region6: #{tpu_custom_call.1} parent=1 // pred_check
      _
    $region7: #{tpu_custom_call.1} parent=1 // pred_check_branch
      %26 = sbr.rel (0) target = $region9
    $region8: #{tpu_custom_call.1} parent=1 // pred_region
      %s28 = ssub.s32 8192, 8192
      %29 = vsyncadd [#allocation7], %s28
      %s30 = sshll.u32 [#allocation6], 4
      %s31 = int_to_ptr.vmem [resolvable:$true] %s30
      %36 = dma.hbm_to_vmem [thread:$0]  %s1, 8192, %s31, [#allocation7], 512, 512, 32
    $region9: #{tpu_custom_call.1} parent=1 // pred_fallthru
      _
    // Predicated region
    $region10: #{tpu_custom_call.1} parent=1 // pred_check
      _
    $region11: #{tpu_custom_call.1} parent=1 // pred_check_branch
      %38 = sbr.rel (0) target = $region13
    $region12: #{tpu_custom_call.1} parent=1 // pred_region
      %s40 = ssub.s32 4096, 4096
      %41 = vsyncadd [#allocation7], %s40
      %s42 = sshll.u32 [#allocation8], 4
      %s43 = int_to_ptr.vmem [resolvable:$true] %s42
      %48 = dma.hbm_to_vmem [thread:$0]  %s2, 4096, %s43, [#allocation7], 64, 64, 4
    $region13: #{tpu_custom_call.1} parent=1 // pred_fallthru
      _
    // Predicated region
    $region14: #{tpu_custom_call.1} parent=1 // pred_check
      _
    $region15: #{tpu_custom_call.1} parent=1 // pred_check_branch
      %50 = sbr.rel (0) target = $region17
    $region16: #{tpu_custom_call.1} parent=1 // pred_region
      _
    $region17: #{tpu_custom_call.1} parent=1 // pred_fallthru
      _
    // Predicated region
    $region18: #{tpu_custom_call.1} parent=1 // pred_check
      _
    $region19: #{tpu_custom_call.1} parent=1 // pred_check_branch
      %52 = sbr.rel (0) target = $region21
    $region20: #{tpu_custom_call.1} parent=1 // pred_region
      _
    $region21: #{tpu_custom_call.1} parent=1 // pred_fallthru
      _
    // Predicated region
    $region22: #{tpu_custom_call.1} parent=1 // pred_check
      _
    $region23: #{tpu_custom_call.1} parent=1 // pred_check_branch
      %54 = sbr.rel (0) target = $region25
    $region24: #{tpu_custom_call.1} parent=1 // pred_region
      %55 = dma.done [#allocation4], 128
    $region25: #{tpu_custom_call.1} parent=1 // pred_fallthru
      _
    // Predicated region
    $region26: #{tpu_custom_call.1} parent=1 // pred_check
      _
    $region27: #{tpu_custom_call.1} parent=1 // pred_check_branch
      %57 = sbr.rel (0) target = $region29
    $region28: #{tpu_custom_call.1} parent=1 // pred_region
      %58 = dma.done [#allocation7], 8192
    $region29: #{tpu_custom_call.1} parent=1 // pred_fallthru
      _
    // Predicated region
    $region30: #{tpu_custom_call.1} parent=1 // pred_check
      _
    $region31: #{tpu_custom_call.1} parent=1 // pred_check_branch
      %60 = sbr.rel (0) target = $region33
    $region32: #{tpu_custom_call.1} parent=1 // pred_region
      %61 = dma.done [#allocation7], 4096
    $region33: #{tpu_custom_call.1} parent=1 // pred_fallthru
      _
    %p63 = scmp.eq.s32.totalorder 0, 0
    // Predicated region
    $region34: #{tpu_custom_call.1} parent=1 // pred_check
      %p64 = pneg %p63
    $region35: #{tpu_custom_call.1} parent=1 // pred_check_branch
      %66 = sbr.rel (%p64) target = $region37
    $region36: #{tpu_custom_call.1} parent=1 // pred_region
      %67 = vst [vmem:[#allocation2] sm:$0xff] 0.0
      %68 = vst [vmem:[#allocation2 + $0x8] sm:$0xff] 0.0
    $region37: #{tpu_custom_call.1} parent=1 // pred_fallthru
      _
    %v69 = vld [vmem:[#allocation3] sm:$0xf]
    %v70 = vld [vmem:[#allocation3 + $0x4] sm:$0xf]
    %v71 = vld [vmem:[#allocation6] sm:$0xff]
    %v72 = vld [vmem:[#allocation6 + $0x8] sm:$0xff]
    %v73 = vld [vmem:[#allocation6 + $0x10] sm:$0xff]
    %v74 = vld [vmem:[#allocation6 + $0x18] sm:$0xff]
    %v75 = vld [vmem:[#allocation6 + $0x20] sm:$0xff]
    %v76 = vld [vmem:[#allocation6 + $0x28] sm:$0xff]
    %v77 = vld [vmem:[#allocation6 + $0x30] sm:$0xff]
    %v78 = vld [vmem:[#allocation6 + $0x38] sm:$0xff]
    %v79 = vld [vmem:[#allocation6 + $0x40] sm:$0xff]
    %v80 = vld [vmem:[#allocation6 + $0x48] sm:$0xff]
    %v81 = vld [vmem:[#allocation6 + $0x50] sm:$0xff]
    %v82 = vld [vmem:[#allocation6 + $0x58] sm:$0xff]
    %v83 = vld [vmem:[#allocation6 + $0x60] sm:$0xff]
    %v84 = vld [vmem:[#allocation6 + $0x68] sm:$0xff]
    %v85 = vld [vmem:[#allocation6 + $0x70] sm:$0xff]
    %v86 = vld [vmem:[#allocation6 + $0x78] sm:$0xff]
    %v87 = vld [vmem:[#allocation6 + $0x80] sm:$0xff]
    %v88 = vld [vmem:[#allocation6 + $0x88] sm:$0xff]
    %v89 = vld [vmem:[#allocation6 + $0x90] sm:$0xff]
    %v90 = vld [vmem:[#allocation6 + $0x98] sm:$0xff]
    %v91 = vld [vmem:[#allocation6 + $0xa0] sm:$0xff]
    %v92 = vld [vmem:[#allocation6 + $0xa8] sm:$0xff]
    %v93 = vld [vmem:[#allocation6 + $0xb0] sm:$0xff]
    %v94 = vld [vmem:[#allocation6 + $0xb8] sm:$0xff]
    %v95 = vld [vmem:[#allocation6 + $0xc0] sm:$0xff]
    %v96 = vld [vmem:[#allocation6 + $0xc8] sm:$0xff]
    %v97 = vld [vmem:[#allocation6 + $0xd0] sm:$0xff]
    %v98 = vld [vmem:[#allocation6 + $0xd8] sm:$0xff]
    %v99 = vld [vmem:[#allocation6 + $0xe0] sm:$0xff]
    %v100 = vld [vmem:[#allocation6 + $0xe8] sm:$0xff]
    %v101 = vld [vmem:[#allocation6 + $0xf0] sm:$0xff]
    %v102 = vld [vmem:[#allocation6 + $0xf8] sm:$0xff]
    %v103 = vld [vmem:[#allocation6 + $0x100] sm:$0xff]
    %v104 = vld [vmem:[#allocation6 + $0x108] sm:$0xff]
    %v105 = vld [vmem:[#allocation6 + $0x110] sm:$0xff]
    %v106 = vld [vmem:[#allocation6 + $0x118] sm:$0xff]
    %v107 = vld [vmem:[#allocation6 + $0x120] sm:$0xff]
    %v108 = vld [vmem:[#allocation6 + $0x128] sm:$0xff]
    %v109 = vld [vmem:[#allocation6 + $0x130] sm:$0xff]
    %v110 = vld [vmem:[#allocation6 + $0x138] sm:$0xff]
    %v111 = vld [vmem:[#allocation6 + $0x140] sm:$0xff]
    %v112 = vld [vmem:[#allocation6 + $0x148] sm:$0xff]
    %v113 = vld [vmem:[#allocation6 + $0x150] sm:$0xff]
    %v114 = vld [vmem:[#allocation6 + $0x158] sm:$0xff]
    %v115 = vld [vmem:[#allocation6 + $0x160] sm:$0xff]
    %v116 = vld [vmem:[#allocation6 + $0x168] sm:$0xff]
    %v117 = vld [vmem:[#allocation6 + $0x170] sm:$0xff]
    %v118 = vld [vmem:[#allocation6 + $0x178] sm:$0xff]
    %v119 = vld [vmem:[#allocation6 + $0x180] sm:$0xff]
    %v120 = vld [vmem:[#allocation6 + $0x188] sm:$0xff]
    %v121 = vld [vmem:[#allocation6 + $0x190] sm:$0xff]
    %v122 = vld [vmem:[#allocation6 + $0x198] sm:$0xff]
    %v123 = vld [vmem:[#allocation6 + $0x1a0] sm:$0xff]
    %v124 = vld [vmem:[#allocation6 + $0x1a8] sm:$0xff]
    %v125 = vld [vmem:[#allocation6 + $0x1b0] sm:$0xff]
    %v126 = vld [vmem:[#allocation6 + $0x1b8] sm:$0xff]
    %v127 = vld [vmem:[#allocation6 + $0x1c0] sm:$0xff]
    %v128 = vld [vmem:[#allocation6 + $0x1c8] sm:$0xff]
    %v129 = vld [vmem:[#allocation6 + $0x1d0] sm:$0xff]
    %v130 = vld [vmem:[#allocation6 + $0x1d8] sm:$0xff]
    %v131 = vld [vmem:[#allocation6 + $0x1e0] sm:$0xff]
    %v132 = vld [vmem:[#allocation6 + $0x1e8] sm:$0xff]
    %v133 = vld [vmem:[#allocation6 + $0x1f0] sm:$0xff]
    %v134 = vld [vmem:[#allocation6 + $0x1f8] sm:$0xff]
    %v137 = vunpack.c.l.b16 %v69
    %v138 = vunpack.c.l.b16 %v70
    %v139 = vpack.c.b16 %v138, %v137
    %v205 = vunpack.c.l.b16 %v71
    %v206 = vunpack.c.h.b16 %v71
    %v207 = vunpack.c.l.b16 %v72
    %v208 = vunpack.c.h.b16 %v72
    %v209 = vunpack.c.l.b16 %v73
    %v210 = vunpack.c.h.b16 %v73
    %v211 = vunpack.c.l.b16 %v74
    %v212 = vunpack.c.h.b16 %v74
    %v213 = vunpack.c.l.b16 %v75
    %v214 = vunpack.c.h.b16 %v75
    %v215 = vunpack.c.l.b16 %v76
    %v216 = vunpack.c.h.b16 %v76
    %v217 = vunpack.c.l.b16 %v77
    %v218 = vunpack.c.h.b16 %v77
    %v219 = vunpack.c.l.b16 %v78
    %v220 = vunpack.c.h.b16 %v78
    %v221 = vunpack.c.l.b16 %v79
    %v222 = vunpack.c.h.b16 %v79
    %v223 = vunpack.c.l.b16 %v80
    %v224 = vunpack.c.h.b16 %v80
    %v225 = vunpack.c.l.b16 %v81
    %v226 = vunpack.c.h.b16 %v81
    %v227 = vunpack.c.l.b16 %v82
    %v228 = vunpack.c.h.b16 %v82
    %v229 = vunpack.c.l.b16 %v83
    %v230 = vunpack.c.h.b16 %v83
    %v231 = vunpack.c.l.b16 %v84
    %v232 = vunpack.c.h.b16 %v84
    %v233 = vunpack.c.l.b16 %v85
    %v234 = vunpack.c.h.b16 %v85
    %v235 = vunpack.c.l.b16 %v86
    %v236 = vunpack.c.h.b16 %v86
    %v237 = vunpack.c.l.b16 %v87
    %v238 = vunpack.c.h.b16 %v87
    %v239 = vunpack.c.l.b16 %v88
    %v240 = vunpack.c.h.b16 %v88
    %v241 = vunpack.c.l.b16 %v89
    %v242 = vunpack.c.h.b16 %v89
    %v243 = vunpack.c.l.b16 %v90
    %v244 = vunpack.c.h.b16 %v90
    %v245 = vunpack.c.l.b16 %v91
    %v246 = vunpack.c.h.b16 %v91
    %v247 = vunpack.c.l.b16 %v92
    %v248 = vunpack.c.h.b16 %v92
    %v249 = vunpack.c.l.b16 %v93
    %v250 = vunpack.c.h.b16 %v93
    %v251 = vunpack.c.l.b16 %v94
    %v252 = vunpack.c.h.b16 %v94
    %v253 = vunpack.c.l.b16 %v95
    %v254 = vunpack.c.h.b16 %v95
    %v255 = vunpack.c.l.b16 %v96
    %v256 = vunpack.c.h.b16 %v96
    %v257 = vunpack.c.l.b16 %v97
    %v258 = vunpack.c.h.b16 %v97
    %v259 = vunpack.c.l.b16 %v98
    %v260 = vunpack.c.h.b16 %v98
    %v261 = vunpack.c.l.b16 %v99
    %v262 = vunpack.c.h.b16 %v99
    %v263 = vunpack.c.l.b16 %v100
    %v264 = vunpack.c.h.b16 %v100
    %v265 = vunpack.c.l.b16 %v101
    %v266 = vunpack.c.h.b16 %v101
    %v267 = vunpack.c.l.b16 %v102
    %v268 = vunpack.c.h.b16 %v102
    %v269 = vunpack.c.l.b16 %v103
    %v270 = vunpack.c.h.b16 %v103
    %v271 = vunpack.c.l.b16 %v104
    %v272 = vunpack.c.h.b16 %v104
    %v273 = vunpack.c.l.b16 %v105
    %v274 = vunpack.c.h.b16 %v105
    %v275 = vunpack.c.l.b16 %v106
    %v276 = vunpack.c.h.b16 %v106
    %v277 = vunpack.c.l.b16 %v107
    %v278 = vunpack.c.h.b16 %v107
    %v279 = vunpack.c.l.b16 %v108
    %v280 = vunpack.c.h.b16 %v108
    %v281 = vunpack.c.l.b16 %v109
    %v282 = vunpack.c.h.b16 %v109
    %v283 = vunpack.c.l.b16 %v110
    %v284 = vunpack.c.h.b16 %v110
    %v285 = vunpack.c.l.b16 %v111
    %v286 = vunpack.c.h.b16 %v111
    %v287 = vunpack.c.l.b16 %v112
    %v288 = vunpack.c.h.b16 %v112
    %v289 = vunpack.c.l.b16 %v113
    %v290 = vunpack.c.h.b16 %v113
    %v291 = vunpack.c.l.b16 %v114
    %v292 = vunpack.c.h.b16 %v114
    %v293 = vunpack.c.l.b16 %v115
    %v294 = vunpack.c.h.b16 %v115
    %v295 = vunpack.c.l.b16 %v116
    %v296 = vunpack.c.h.b16 %v116
    %v297 = vunpack.c.l.b16 %v117
    %v298 = vunpack.c.h.b16 %v117
    %v299 = vunpack.c.l.b16 %v118
    %v300 = vunpack.c.h.b16 %v118
    %v301 = vunpack.c.l.b16 %v119
    %v302 = vunpack.c.h.b16 %v119
    %v303 = vunpack.c.l.b16 %v120
    %v304 = vunpack.c.h.b16 %v120
    %v305 = vunpack.c.l.b16 %v121
    %v306 = vunpack.c.h.b16 %v121
    %v307 = vunpack.c.l.b16 %v122
    %v308 = vunpack.c.h.b16 %v122
    %v309 = vunpack.c.l.b16 %v123
    %v310 = vunpack.c.h.b16 %v123
    %v311 = vunpack.c.l.b16 %v124
    %v312 = vunpack.c.h.b16 %v124
    %v313 = vunpack.c.l.b16 %v125
    %v314 = vunpack.c.h.b16 %v125
    %v315 = vunpack.c.l.b16 %v126
    %v316 = vunpack.c.h.b16 %v126
    %v317 = vunpack.c.l.b16 %v127
    %v318 = vunpack.c.h.b16 %v127
    %v319 = vunpack.c.l.b16 %v128
    %v320 = vunpack.c.h.b16 %v128
    %v321 = vunpack.c.l.b16 %v129
    %v322 = vunpack.c.h.b16 %v129
    %v323 = vunpack.c.l.b16 %v130
    %v324 = vunpack.c.h.b16 %v130
    %v325 = vunpack.c.l.b16 %v131
    %v326 = vunpack.c.h.b16 %v131
    %v327 = vunpack.c.l.b16 %v132
    %v328 = vunpack.c.h.b16 %v132
    %v329 = vunpack.c.l.b16 %v133
    %v330 = vunpack.c.h.b16 %v133
    %v331 = vunpack.c.l.b16 %v134
    %v332 = vunpack.c.h.b16 %v134
    %v333 = vpack.c.b16 %v213, %v205
    %v334 = vpack.c.b16 %v214, %v206
    %v335 = vpack.c.b16 %v215, %v207
    %v336 = vpack.c.b16 %v216, %v208
    %v337 = vpack.c.b16 %v217, %v209
    %v338 = vpack.c.b16 %v218, %v210
    %v339 = vpack.c.b16 %v219, %v211
    %v340 = vpack.c.b16 %v220, %v212
    %v341 = vpack.c.b16 %v229, %v221
    %v342 = vpack.c.b16 %v230, %v222
    %v343 = vpack.c.b16 %v231, %v223
    %v344 = vpack.c.b16 %v232, %v224
    %v345 = vpack.c.b16 %v233, %v225
    %v346 = vpack.c.b16 %v234, %v226
    %v347 = vpack.c.b16 %v235, %v227
    %v348 = vpack.c.b16 %v236, %v228
    %v349 = vpack.c.b16 %v245, %v237
    %v350 = vpack.c.b16 %v246, %v238
    %v351 = vpack.c.b16 %v247, %v239
    %v352 = vpack.c.b16 %v248, %v240
    %v353 = vpack.c.b16 %v249, %v241
    %v354 = vpack.c.b16 %v250, %v242
    %v355 = vpack.c.b16 %v251, %v243
    %v356 = vpack.c.b16 %v252, %v244
    %v357 = vpack.c.b16 %v261, %v253
    %v358 = vpack.c.b16 %v262, %v254
    %v359 = vpack.c.b16 %v263, %v255
    %v360 = vpack.c.b16 %v264, %v256
    %v361 = vpack.c.b16 %v265, %v257
    %v362 = vpack.c.b16 %v266, %v258
    %v363 = vpack.c.b16 %v267, %v259
    %v364 = vpack.c.b16 %v268, %v260
    %v365 = vpack.c.b16 %v277, %v269
    %v366 = vpack.c.b16 %v278, %v270
    %v367 = vpack.c.b16 %v279, %v271
    %v368 = vpack.c.b16 %v280, %v272
    %v369 = vpack.c.b16 %v281, %v273
    %v370 = vpack.c.b16 %v282, %v274
    %v371 = vpack.c.b16 %v283, %v275
    %v372 = vpack.c.b16 %v284, %v276
    %v373 = vpack.c.b16 %v293, %v285
    %v374 = vpack.c.b16 %v294, %v286
    %v375 = vpack.c.b16 %v295, %v287
    %v376 = vpack.c.b16 %v296, %v288
    %v377 = vpack.c.b16 %v297, %v289
    %v378 = vpack.c.b16 %v298, %v290
    %v379 = vpack.c.b16 %v299, %v291
    %v380 = vpack.c.b16 %v300, %v292
    %v381 = vpack.c.b16 %v309, %v301
    %v382 = vpack.c.b16 %v310, %v302
    %v383 = vpack.c.b16 %v311, %v303
    %v384 = vpack.c.b16 %v312, %v304
    %v385 = vpack.c.b16 %v313, %v305
    %v386 = vpack.c.b16 %v314, %v306
    %v387 = vpack.c.b16 %v315, %v307
    %v388 = vpack.c.b16 %v316, %v308
    %v389 = vpack.c.b16 %v325, %v317
    %v390 = vpack.c.b16 %v326, %v318
    %v391 = vpack.c.b16 %v327, %v319
    %v392 = vpack.c.b16 %v328, %v320
    %v393 = vpack.c.b16 %v329, %v321
    %v394 = vpack.c.b16 %v330, %v322
    %v395 = vpack.c.b16 %v331, %v323
    %v396 = vpack.c.b16 %v332, %v324
    %461 = vmatprep.subr.bf16.mxu0 %v334
    %462 = vmatpush1.bf16.msra.mxu0 %v333
    %463 = vmatprep.subr.bf16.mxu0 %v342
    %464 = vmatpush1.bf16.msra.mxu0 %v341
    %465 = vmatprep.subr.bf16.mxu0 %v350
    %466 = vmatpush1.bf16.msra.mxu0 %v349
    %467 = vmatprep.subr.bf16.mxu0 %v358
    %468 = vmatpush1.bf16.msra.mxu0 %v357
    %469 = vmatprep.subr.bf16.mxu0 %v366
    %470 = vmatpush1.bf16.msra.mxu0 %v365
    %471 = vmatprep.subr.bf16.mxu0 %v374
    %472 = vmatpush1.bf16.msra.mxu0 %v373
    %473 = vmatprep.subr.bf16.mxu0 %v382
    %474 = vmatpush1.bf16.msra.mxu0 %v381
    %475 = vmatprep.subr.bf16.mxu0 %v390
    %476 = vmatpush1.bf16.msra.mxu0 %v389
    %477 = vmatprep.subr.bf16.mxu0 0
    %478 = vmatpush1.bf16.msra.mxu0 0
    %479 = vmatprep.subr.bf16.mxu0 0
    %480 = vmatpush1.bf16.msra.mxu0 0
    %481 = vmatprep.subr.bf16.mxu0 0
    %482 = vmatpush1.bf16.msra.mxu0 0
    %483 = vmatprep.subr.bf16.mxu0 0
    %484 = vmatpush1.bf16.msra.mxu0 0
    %485 = vmatprep.subr.bf16.mxu0 0
    %486 = vmatpush1.bf16.msra.mxu0 0
    %487 = vmatprep.subr.bf16.mxu0 0
    %488 = vmatpush1.bf16.msra.mxu0 0
    %489 = vmatprep.subr.bf16.mxu0 0
    %490 = vmatpush1.bf16.msra.mxu0 0
    %491 = vmatprep.subr.bf16.mxu0 0
    %492 = vmatpush1.bf16.msra.mxu0 0
    %493 = vmatprep.mubr.bf16.mxu0 0
    %494 = vmatmul.mubr.bf16.gmra.mrb[0].mxu0 %v139
    %v495 = vpop.f32.mrb[0].mxu0
    %v496 = vadd.f32 0.0, %v495
    %v497 = vpop.f32.mrb[0].mxu0
    %v498 = vadd.f32 0.0, %v497
    %v499 = vpop.f32.mrb[0].mxu0
    %v500 = vadd.f32 0.0, %v499
    %v501 = vpop.f32.mrb[0].mxu0
    %v502 = vadd.f32 0.0, %v501
    %503 = vdwg.mxu0
    %504 = vmatprep.subr.bf16.mxu0 %v336
    %505 = vmatpush1.bf16.msra.mxu0 %v335
    %506 = vmatprep.subr.bf16.mxu0 %v344
    %507 = vmatpush1.bf16.msra.mxu0 %v343
    %508 = vmatprep.subr.bf16.mxu0 %v352
    %509 = vmatpush1.bf16.msra.mxu0 %v351
    %510 = vmatprep.subr.bf16.mxu0 %v360
    %511 = vmatpush1.bf16.msra.mxu0 %v359
    %512 = vmatprep.subr.bf16.mxu0 %v368
    %513 = vmatpush1.bf16.msra.mxu0 %v367
    %514 = vmatprep.subr.bf16.mxu0 %v376
    %515 = vmatpush1.bf16.msra.mxu0 %v375
    %516 = vmatprep.subr.bf16.mxu0 %v384
    %517 = vmatpush1.bf16.msra.mxu0 %v383
    %518 = vmatprep.subr.bf16.mxu0 %v392
    %519 = vmatpush1.bf16.msra.mxu0 %v391
    %520 = vmatprep.subr.bf16.mxu0 0
    %521 = vmatpush1.bf16.msra.mxu0 0
    %522 = vmatprep.subr.bf16.mxu0 0
    %523 = vmatpush1.bf16.msra.mxu0 0
    %524 = vmatprep.subr.bf16.mxu0 0
    %525 = vmatpush1.bf16.msra.mxu0 0
    %526 = vmatprep.subr.bf16.mxu0 0
    %527 = vmatpush1.bf16.msra.mxu0 0
    %528 = vmatprep.subr.bf16.mxu0 0
    %529 = vmatpush1.bf16.msra.mxu0 0
    %530 = vmatprep.subr.bf16.mxu0 0
    %531 = vmatpush1.bf16.msra.mxu0 0
    %532 = vmatprep.subr.bf16.mxu0 0
    %533 = vmatpush1.bf16.msra.mxu0 0
    %534 = vmatprep.subr.bf16.mxu0 0
    %535 = vmatpush1.bf16.msra.mxu0 0
    %536 = vmatprep.mubr.bf16.mxu0 0
    %537 = vmatmul.mubr.bf16.gmra.mrb[0].mxu0 %v139
    %v538 = vpop.f32.mrb[0].mxu0
    %v539 = vadd.f32 0.0, %v538
    %v540 = vpop.f32.mrb[0].mxu0
    %v541 = vadd.f32 0.0, %v540
    %v542 = vpop.f32.mrb[0].mxu0
    %v543 = vadd.f32 0.0, %v542
    %v544 = vpop.f32.mrb[0].mxu0
    %v545 = vadd.f32 0.0, %v544
    %546 = vdwg.mxu0
    %547 = vmatprep.subr.bf16.mxu0 %v338
    %548 = vmatpush1.bf16.msra.mxu0 %v337
    %549 = vmatprep.subr.bf16.mxu0 %v346
    %550 = vmatpush1.bf16.msra.mxu0 %v345
    %551 = vmatprep.subr.bf16.mxu0 %v354
    %552 = vmatpush1.bf16.msra.mxu0 %v353
    %553 = vmatprep.subr.bf16.mxu0 %v362
    %554 = vmatpush1.bf16.msra.mxu0 %v361
    %555 = vmatprep.subr.bf16.mxu0 %v370
    %556 = vmatpush1.bf16.msra.mxu0 %v369
    %557 = vmatprep.subr.bf16.mxu0 %v378
    %558 = vmatpush1.bf16.msra.mxu0 %v377
    %559 = vmatprep.subr.bf16.mxu0 %v386
    %560 = vmatpush1.bf16.msra.mxu0 %v385
    %561 = vmatprep.subr.bf16.mxu0 %v394
    %562 = vmatpush1.bf16.msra.mxu0 %v393
    %563 = vmatprep.subr.bf16.mxu0 0
    %564 = vmatpush1.bf16.msra.mxu0 0
    %565 = vmatprep.subr.bf16.mxu0 0
    %566 = vmatpush1.bf16.msra.mxu0 0
    %567 = vmatprep.subr.bf16.mxu0 0
    %568 = vmatpush1.bf16.msra.mxu0 0
    %569 = vmatprep.subr.bf16.mxu0 0
    %570 = vmatpush1.bf16.msra.mxu0 0
    %571 = vmatprep.subr.bf16.mxu0 0
    %572 = vmatpush1.bf16.msra.mxu0 0
    %573 = vmatprep.subr.bf16.mxu0 0
    %574 = vmatpush1.bf16.msra.mxu0 0
    %575 = vmatprep.subr.bf16.mxu0 0
    %576 = vmatpush1.bf16.msra.mxu0 0
    %577 = vmatprep.subr.bf16.mxu0 0
    %578 = vmatpush1.bf16.msra.mxu0 0
    %579 = vmatprep.mubr.bf16.mxu0 0
    %580 = vmatmul.mubr.bf16.gmra.mrb[0].mxu0 %v139
    %v581 = vpop.f32.mrb[0].mxu0
    %v582 = vadd.f32 0.0, %v581
    %v583 = vpop.f32.mrb[0].mxu0
    %v584 = vadd.f32 0.0, %v583
    %v585 = vpop.f32.mrb[0].mxu0
    %v586 = vadd.f32 0.0, %v585
    %v587 = vpop.f32.mrb[0].mxu0
    %v588 = vadd.f32 0.0, %v587
    %589 = vdwg.mxu0
    %590 = vmatprep.subr.bf16.mxu0 %v340
    %591 = vmatpush1.bf16.msra.mxu0 %v339
    %592 = vmatprep.subr.bf16.mxu0 %v348
    %593 = vmatpush1.bf16.msra.mxu0 %v347
    %594 = vmatprep.subr.bf16.mxu0 %v356
    %595 = vmatpush1.bf16.msra.mxu0 %v355
    %596 = vmatprep.subr.bf16.mxu0 %v364
    %597 = vmatpush1.bf16.msra.mxu0 %v363
    %598 = vmatprep.subr.bf16.mxu0 %v372
    %599 = vmatpush1.bf16.msra.mxu0 %v371
    %600 = vmatprep.subr.bf16.mxu0 %v380
    %601 = vmatpush1.bf16.msra.mxu0 %v379
    %602 = vmatprep.subr.bf16.mxu0 %v388
    %603 = vmatpush1.bf16.msra.mxu0 %v387
    %604 = vmatprep.subr.bf16.mxu0 %v396
    %605 = vmatpush1.bf16.msra.mxu0 %v395
    %606 = vmatprep.subr.bf16.mxu0 0
    %607 = vmatpush1.bf16.msra.mxu0 0
    %608 = vmatprep.subr.bf16.mxu0 0
    %609 = vmatpush1.bf16.msra.mxu0 0
    %610 = vmatprep.subr.bf16.mxu0 0
    %611 = vmatpush1.bf16.msra.mxu0 0
    %612 = vmatprep.subr.bf16.mxu0 0
    %613 = vmatpush1.bf16.msra.mxu0 0
    %614 = vmatprep.subr.bf16.mxu0 0
    %615 = vmatpush1.bf16.msra.mxu0 0
    %616 = vmatprep.subr.bf16.mxu0 0
    %617 = vmatpush1.bf16.msra.mxu0 0
    %618 = vmatprep.subr.bf16.mxu0 0
    %619 = vmatpush1.bf16.msra.mxu0 0
    %620 = vmatprep.subr.bf16.mxu0 0
    %621 = vmatpush1.bf16.msra.mxu0 0
    %622 = vmatprep.mubr.bf16.mxu0 0
    %623 = vmatmul.mubr.bf16.gmra.mrb[0].mxu0 %v139
    %v624 = vpop.f32.mrb[0].mxu0
    %v625 = vadd.f32 0.0, %v624
    %v626 = vpop.f32.mrb[0].mxu0
    %v627 = vadd.f32 0.0, %v626
    %v628 = vpop.f32.mrb[0].mxu0
    %v629 = vadd.f32 0.0, %v628
    %v630 = vpop.f32.mrb[0].mxu0
    %v631 = vadd.f32 0.0, %v630
    %632 = vdwg.mxu0
    %v633 = vmax.f32 %v496, 0.0
    %v634 = vmax.f32 %v498, 0.0
    %v635 = vmax.f32 %v539, 0.0
    %v636 = vmax.f32 %v541, 0.0
    %v637 = vmax.f32 %v500, 0.0
    %v638 = vmax.f32 %v502, 0.0
    %v639 = vmax.f32 %v543, 0.0
    %v640 = vmax.f32 %v545, 0.0
    %v641 = vmul.f32 %v633, %v582
    %v642 = vmul.f32 %v634, %v584
    %v643 = vmul.f32 %v635, %v625
    %v644 = vmul.f32 %v636, %v627
    %v645 = vmul.f32 %v637, %v586
    %v646 = vmul.f32 %v638, %v588
    %v647 = vmul.f32 %v639, %v629
    %v648 = vmul.f32 %v640, %v631
    %v649 = vpack.c.bf16 %v645, %v641
    %v650 = vpack.c.bf16 %v646, %v642
    %v651 = vpack.c.bf16 %v647, %v643
    %v652 = vpack.c.bf16 %v648, %v644
    %v653 = vld [vmem:[#allocation2] sm:$0xff]
    %v654 = vld [vmem:[#allocation2 + $0x8] sm:$0xff]
    %v655 = vld [vmem:[#allocation8] sm:$0xf]
    %v656 = vld [vmem:[#allocation8 + $0x4] sm:$0xf]
    %v657 = vld [vmem:[#allocation8 + $0x8] sm:$0xf]
    %v658 = vld [vmem:[#allocation8 + $0xc] sm:$0xf]
    %v659 = vld [vmem:[#allocation8 + $0x10] sm:$0xf]
    %v660 = vld [vmem:[#allocation8 + $0x14] sm:$0xf]
    %v661 = vld [vmem:[#allocation8 + $0x18] sm:$0xf]
    %v662 = vld [vmem:[#allocation8 + $0x1c] sm:$0xf]
    %v663 = vld [vmem:[#allocation8 + $0x20] sm:$0xf]
    %v664 = vld [vmem:[#allocation8 + $0x24] sm:$0xf]
    %v665 = vld [vmem:[#allocation8 + $0x28] sm:$0xf]
    %v666 = vld [vmem:[#allocation8 + $0x2c] sm:$0xf]
    %v667 = vld [vmem:[#allocation8 + $0x30] sm:$0xf]
    %v668 = vld [vmem:[#allocation8 + $0x34] sm:$0xf]
    %v669 = vld [vmem:[#allocation8 + $0x38] sm:$0xf]
    %v670 = vld [vmem:[#allocation8 + $0x3c] sm:$0xf]
    %v671 = vld [vmem:[#allocation8 + $0x40] sm:$0xf]
    %v672 = vld [vmem:[#allocation8 + $0x44] sm:$0xf]
    %v673 = vld [vmem:[#allocation8 + $0x48] sm:$0xf]
    %v674 = vld [vmem:[#allocation8 + $0x4c] sm:$0xf]
    %v675 = vld [vmem:[#allocation8 + $0x50] sm:$0xf]
    %v676 = vld [vmem:[#allocation8 + $0x54] sm:$0xf]
    %v677 = vld [vmem:[#allocation8 + $0x58] sm:$0xf]
    %v678 = vld [vmem:[#allocation8 + $0x5c] sm:$0xf]
    %v679 = vld [vmem:[#allocation8 + $0x60] sm:$0xf]
    %v680 = vld [vmem:[#allocation8 + $0x64] sm:$0xf]
    %v681 = vld [vmem:[#allocation8 + $0x68] sm:$0xf]
    %v682 = vld [vmem:[#allocation8 + $0x6c] sm:$0xf]
    %v683 = vld [vmem:[#allocation8 + $0x70] sm:$0xf]
    %v684 = vld [vmem:[#allocation8 + $0x74] sm:$0xf]
    %v685 = vld [vmem:[#allocation8 + $0x78] sm:$0xf]
    %v686 = vld [vmem:[#allocation8 + $0x7c] sm:$0xf]
    %v687 = vld [vmem:[#allocation8 + $0x80] sm:$0xf]
    %v688 = vld [vmem:[#allocation8 + $0x84] sm:$0xf]
    %v689 = vld [vmem:[#allocation8 + $0x88] sm:$0xf]
    %v690 = vld [vmem:[#allocation8 + $0x8c] sm:$0xf]
    %v691 = vld [vmem:[#allocation8 + $0x90] sm:$0xf]
    %v692 = vld [vmem:[#allocation8 + $0x94] sm:$0xf]
    %v693 = vld [vmem:[#allocation8 + $0x98] sm:$0xf]
    %v694 = vld [vmem:[#allocation8 + $0x9c] sm:$0xf]
    %v695 = vld [vmem:[#allocation8 + $0xa0] sm:$0xf]
    %v696 = vld [vmem:[#allocation8 + $0xa4] sm:$0xf]
    %v697 = vld [vmem:[#allocation8 + $0xa8] sm:$0xf]
    %v698 = vld [vmem:[#allocation8 + $0xac] sm:$0xf]
    %v699 = vld [vmem:[#allocation8 + $0xb0] sm:$0xf]
    %v700 = vld [vmem:[#allocation8 + $0xb4] sm:$0xf]
    %v701 = vld [vmem:[#allocation8 + $0xb8] sm:$0xf]
    %v702 = vld [vmem:[#allocation8 + $0xbc] sm:$0xf]
    %v703 = vld [vmem:[#allocation8 + $0xc0] sm:$0xf]
    %v704 = vld [vmem:[#allocation8 + $0xc4] sm:$0xf]
    %v705 = vld [vmem:[#allocation8 + $0xc8] sm:$0xf]
    %v706 = vld [vmem:[#allocation8 + $0xcc] sm:$0xf]
    %v707 = vld [vmem:[#allocation8 + $0xd0] sm:$0xf]
    %v708 = vld [vmem:[#allocation8 + $0xd4] sm:$0xf]
    %v709 = vld [vmem:[#allocation8 + $0xd8] sm:$0xf]
    %v710 = vld [vmem:[#allocation8 + $0xdc] sm:$0xf]
    %v711 = vld [vmem:[#allocation8 + $0xe0] sm:$0xf]
    %v712 = vld [vmem:[#allocation8 + $0xe4] sm:$0xf]
    %v713 = vld [vmem:[#allocation8 + $0xe8] sm:$0xf]
    %v714 = vld [vmem:[#allocation8 + $0xec] sm:$0xf]
    %v715 = vld [vmem:[#allocation8 + $0xf0] sm:$0xf]
    %v716 = vld [vmem:[#allocation8 + $0xf4] sm:$0xf]
    %v717 = vld [vmem:[#allocation8 + $0xf8] sm:$0xf]
    %v718 = vld [vmem:[#allocation8 + $0xfc] sm:$0xf]
    %v783 = vunpack.c.l.b16 %v655
    %v784 = vunpack.c.l.b16 %v656
    %v785 = vunpack.c.l.b16 %v657
    %v786 = vunpack.c.l.b16 %v658
    %v787 = vunpack.c.l.b16 %v659
    %v788 = vunpack.c.l.b16 %v660
    %v789 = vunpack.c.l.b16 %v661
    %v790 = vunpack.c.l.b16 %v662
    %v791 = vunpack.c.l.b16 %v663
    %v792 = vunpack.c.l.b16 %v664
    %v793 = vunpack.c.l.b16 %v665
    %v794 = vunpack.c.l.b16 %v666
    %v795 = vunpack.c.l.b16 %v667
    %v796 = vunpack.c.l.b16 %v668
    %v797 = vunpack.c.l.b16 %v669
    %v798 = vunpack.c.l.b16 %v670
    %v799 = vunpack.c.l.b16 %v671
    %v800 = vunpack.c.l.b16 %v672
    %v801 = vunpack.c.l.b16 %v673
    %v802 = vunpack.c.l.b16 %v674
    %v803 = vunpack.c.l.b16 %v675
    %v804 = vunpack.c.l.b16 %v676
    %v805 = vunpack.c.l.b16 %v677
    %v806 = vunpack.c.l.b16 %v678
    %v807 = vunpack.c.l.b16 %v679
    %v808 = vunpack.c.l.b16 %v680
    %v809 = vunpack.c.l.b16 %v681
    %v810 = vunpack.c.l.b16 %v682
    %v811 = vunpack.c.l.b16 %v683
    %v812 = vunpack.c.l.b16 %v684
    %v813 = vunpack.c.l.b16 %v685
    %v814 = vunpack.c.l.b16 %v686
    %v815 = vunpack.c.l.b16 %v687
    %v816 = vunpack.c.l.b16 %v688
    %v817 = vunpack.c.l.b16 %v689
    %v818 = vunpack.c.l.b16 %v690
    %v819 = vunpack.c.l.b16 %v691
    %v820 = vunpack.c.l.b16 %v692
    %v821 = vunpack.c.l.b16 %v693
    %v822 = vunpack.c.l.b16 %v694
    %v823 = vunpack.c.l.b16 %v695
    %v824 = vunpack.c.l.b16 %v696
    %v825 = vunpack.c.l.b16 %v697
    %v826 = vunpack.c.l.b16 %v698
    %v827 = vunpack.c.l.b16 %v699
    %v828 = vunpack.c.l.b16 %v700
    %v829 = vunpack.c.l.b16 %v701
    %v830 = vunpack.c.l.b16 %v702
    %v831 = vunpack.c.l.b16 %v703
    %v832 = vunpack.c.l.b16 %v704
    %v833 = vunpack.c.l.b16 %v705
    %v834 = vunpack.c.l.b16 %v706
    %v835 = vunpack.c.l.b16 %v707
    %v836 = vunpack.c.l.b16 %v708
    %v837 = vunpack.c.l.b16 %v709
    %v838 = vunpack.c.l.b16 %v710
    %v839 = vunpack.c.l.b16 %v711
    %v840 = vunpack.c.l.b16 %v712
    %v841 = vunpack.c.l.b16 %v713
    %v842 = vunpack.c.l.b16 %v714
    %v843 = vunpack.c.l.b16 %v715
    %v844 = vunpack.c.l.b16 %v716
    %v845 = vunpack.c.l.b16 %v717
    %v846 = vunpack.c.l.b16 %v718
    %v847 = vpack.c.b16 %v784, %v783
    %v848 = vpack.c.b16 %v786, %v785
    %v849 = vpack.c.b16 %v788, %v787
    %v850 = vpack.c.b16 %v790, %v789
    %v851 = vpack.c.b16 %v792, %v791
    %v852 = vpack.c.b16 %v794, %v793
    %v853 = vpack.c.b16 %v796, %v795
    %v854 = vpack.c.b16 %v798, %v797
    %v855 = vpack.c.b16 %v800, %v799
    %v856 = vpack.c.b16 %v802, %v801
    %v857 = vpack.c.b16 %v804, %v803
    %v858 = vpack.c.b16 %v806, %v805
    %v859 = vpack.c.b16 %v808, %v807
    %v860 = vpack.c.b16 %v810, %v809
    %v861 = vpack.c.b16 %v812, %v811
    %v862 = vpack.c.b16 %v814, %v813
    %v863 = vpack.c.b16 %v816, %v815
    %v864 = vpack.c.b16 %v818, %v817
    %v865 = vpack.c.b16 %v820, %v819
    %v866 = vpack.c.b16 %v822, %v821
    %v867 = vpack.c.b16 %v824, %v823
    %v868 = vpack.c.b16 %v826, %v825
    %v869 = vpack.c.b16 %v828, %v827
    %v870 = vpack.c.b16 %v830, %v829
    %v871 = vpack.c.b16 %v832, %v831
    %v872 = vpack.c.b16 %v834, %v833
    %v873 = vpack.c.b16 %v836, %v835
    %v874 = vpack.c.b16 %v838, %v837
    %v875 = vpack.c.b16 %v840, %v839
    %v876 = vpack.c.b16 %v842, %v841
    %v877 = vpack.c.b16 %v844, %v843
    %v878 = vpack.c.b16 %v846, %v845
    %911 = vmatprep.subr.bf16.mxu0 0
    %912 = vmatpush1.bf16.msra.mxu0 %v847
    %913 = vmatprep.subr.bf16.mxu0 0
    %914 = vmatpush1.bf16.msra.mxu0 %v848
    %915 = vmatprep.subr.bf16.mxu0 0
    %916 = vmatpush1.bf16.msra.mxu0 %v849
    %917 = vmatprep.subr.bf16.mxu0 0
    %918 = vmatpush1.bf16.msra.mxu0 %v850
    %919 = vmatprep.subr.bf16.mxu0 0
    %920 = vmatpush1.bf16.msra.mxu0 %v851
    %921 = vmatprep.subr.bf16.mxu0 0
    %922 = vmatpush1.bf16.msra.mxu0 %v852
    %923 = vmatprep.subr.bf16.mxu0 0
    %924 = vmatpush1.bf16.msra.mxu0 %v853
    %925 = vmatprep.subr.bf16.mxu0 0
    %926 = vmatpush1.bf16.msra.mxu0 %v854
    %927 = vmatprep.subr.bf16.mxu0 0
    %928 = vmatpush1.bf16.msra.mxu0 %v855
    %929 = vmatprep.subr.bf16.mxu0 0
    %930 = vmatpush1.bf16.msra.mxu0 %v856
    %931 = vmatprep.subr.bf16.mxu0 0
    %932 = vmatpush1.bf16.msra.mxu0 %v857
    %933 = vmatprep.subr.bf16.mxu0 0
    %934 = vmatpush1.bf16.msra.mxu0 %v858
    %935 = vmatprep.subr.bf16.mxu0 0
    %936 = vmatpush1.bf16.msra.mxu0 %v859
    %937 = vmatprep.subr.bf16.mxu0 0
    %938 = vmatpush1.bf16.msra.mxu0 %v860
    %939 = vmatprep.subr.bf16.mxu0 0
    %940 = vmatpush1.bf16.msra.mxu0 %v861
    %941 = vmatprep.subr.bf16.mxu0 0
    %942 = vmatpush1.bf16.msra.mxu0 %v862
    %943 = vmatprep.mubr.bf16.mxu0 %v650
    %944 = vmatmul.mubr.bf16.gmra.mrb[0].mxu0 %v649
    %v945 = vpop.f32.mrb[0].mxu0
    %v946 = vadd.f32 0.0, %v945
    %v947 = vpop.f32.mrb[0].mxu0
    %v948 = vpop.f32.mrb[0].mxu0
    %v949 = vadd.f32 0.0, %v948
    %v950 = vpop.f32.mrb[0].mxu0
    %951 = vdwg.mxu0
    %952 = vmatprep.subr.bf16.mxu0 0
    %953 = vmatpush1.bf16.msra.mxu0 %v863
    %954 = vmatprep.subr.bf16.mxu0 0
    %955 = vmatpush1.bf16.msra.mxu0 %v864
    %956 = vmatprep.subr.bf16.mxu0 0
    %957 = vmatpush1.bf16.msra.mxu0 %v865
    %958 = vmatprep.subr.bf16.mxu0 0
    %959 = vmatpush1.bf16.msra.mxu0 %v866
    %960 = vmatprep.subr.bf16.mxu0 0
    %961 = vmatpush1.bf16.msra.mxu0 %v867
    %962 = vmatprep.subr.bf16.mxu0 0
    %963 = vmatpush1.bf16.msra.mxu0 %v868
    %964 = vmatprep.subr.bf16.mxu0 0
    %965 = vmatpush1.bf16.msra.mxu0 %v869
    %966 = vmatprep.subr.bf16.mxu0 0
    %967 = vmatpush1.bf16.msra.mxu0 %v870
    %968 = vmatprep.subr.bf16.mxu0 0
    %969 = vmatpush1.bf16.msra.mxu0 %v871
    %970 = vmatprep.subr.bf16.mxu0 0
    %971 = vmatpush1.bf16.msra.mxu0 %v872
    %972 = vmatprep.subr.bf16.mxu0 0
    %973 = vmatpush1.bf16.msra.mxu0 %v873
    %974 = vmatprep.subr.bf16.mxu0 0
    %975 = vmatpush1.bf16.msra.mxu0 %v874
    %976 = vmatprep.subr.bf16.mxu0 0
    %977 = vmatpush1.bf16.msra.mxu0 %v875
    %978 = vmatprep.subr.bf16.mxu0 0
    %979 = vmatpush1.bf16.msra.mxu0 %v876
    %980 = vmatprep.subr.bf16.mxu0 0
    %981 = vmatpush1.bf16.msra.mxu0 %v877
    %982 = vmatprep.subr.bf16.mxu0 0
    %983 = vmatpush1.bf16.msra.mxu0 %v878
    %984 = vmatprep.mubr.bf16.mxu0 %v652
    %985 = vmatmul.mubr.bf16.gmra.mrb[0].mxu0 %v651
    %v986 = vpop.f32.mrb[0].mxu0
    %v987 = vadd.f32 %v946, %v986
    %v988 = vpop.f32.mrb[0].mxu0
    %v989 = vpop.f32.mrb[0].mxu0
    %v990 = vadd.f32 %v949, %v989
    %v991 = vpop.f32.mrb[0].mxu0
    %992 = vdwg.mxu0
    %v993 = vadd.f32 %v653, %v987
    %v994 = vadd.f32 %v654, %v990
    %995 = vst [vmem:[#allocation2] sm:$0xff] %v993
    %996 = vst [vmem:[#allocation2 + $0x8] sm:$0xff] %v994
    // Predicated region
    $region38: #{tpu_custom_call.1} parent=1 // pred_check
      %p997 = pneg %p63
    $region39: #{tpu_custom_call.1} parent=1 // pred_check_branch
      %999 = sbr.rel (%p997) target = $region41
    $region40: #{tpu_custom_call.1} parent=1 // pred_region
      %v1000 = vunpack.c.l.bf16 %v69
      %v1001 = vunpack.c.l.bf16 %v70
      %v1002 = vmul.f32 %v1000, 1.5
      %v1003 = vmul.f32 %v1001, 1.5
      %v1004 = vld [vmem:[#allocation2] sm:$0xff]
      %v1005 = vld [vmem:[#allocation2 + $0x8] sm:$0xff]
      %v1006 = vadd.f32 %v1002, %v1004
      %v1007 = vadd.f32 %v1003, %v1005
      %1008 = vadd.xlane.f32.xlu0 %v1006
      %v1009 = vpop.xlane.xlu0 %1008
      %1010 = vadd.xlane.f32.xlu0 %v1007
      %v1011 = vpop.xlane.xlu0 %1010
      %v1012 = vrcp.pop 128.0
      %v1013 = vmul.f32 %v1009, %v1012
      %v1014 = vmul.f32 %v1011, %v1012
      %v1015 = vsub.f32 %v1006, %v1013
      %v1016 = vsub.f32 %v1007, %v1014
      %v1017 = vmul.f32 %v1015, %v1015
      %v1018 = vmul.f32 %v1016, %v1016
      %1019 = vadd.xlane.f32.xlu0 %v1017
      %v1020 = vpop.xlane.xlu0 %1019
      %1021 = vadd.xlane.f32.xlu0 %v1018
      %v1022 = vpop.xlane.xlu0 %1021
      %v1023 = vmul.f32 %v1020, %v1012
      %v1024 = vmul.f32 %v1022, %v1012
      %v1025 = vadd.f32 %v1023, 1e-05
      %v1026 = vadd.f32 %v1024, 1e-05
      %v1027 = vrsqrt.pop %v1025
      %v1028 = vrsqrt.pop %v1026
      %v1029 = vmul.f32 %v1015, %v1027
      %v1030 = vmul.f32 %v1016, %v1028
      %v1031 = vld [vmem:[%s3] sm:$0x1]
      %v1033 = vlaneseq
      %v1034 = vshrl.u32 %v1033, 7
      %v1035 = vsub.s32 0, %v1034
      %v1036 = vrot.slane %v1031, %v1035
      %v1038 = vmul.f32 %v1029, %v1036
      %v1039 = vmul.f32 %v1030, %v1036
      %v1040 = vld [vmem:[%s4] sm:$0x1]
      %v1042 = vlaneseq
      %v1043 = vshrl.u32 %v1042, 7
      %v1044 = vsub.s32 0, %v1043
      %v1045 = vrot.slane %v1040, %v1044
      %v1047 = vadd.f32 %v1038, %v1045
      %v1048 = vadd.f32 %v1039, %v1045
      %1049 = vst [vmem:[#allocation9] sm:$0xff] %v1047
      %1050 = vst [vmem:[#allocation9 + $0x8] sm:$0xff] %v1048
    $region41: #{tpu_custom_call.1} parent=1 // pred_fallthru
      _
    // Predicated region
    $region42: #{tpu_custom_call.1} parent=1 // pred_check
      _
    $region43: #{tpu_custom_call.1} parent=1 // pred_check_branch
      %1052 = sbr.rel (0) target = $region45
    $region44: #{tpu_custom_call.1} parent=1 // pred_region
      %s1054 = ssub.s32 256, 256
      %1055 = vsyncadd [#allocation5], %s1054
      %s1056 = sshll.u32 [#allocation9], 4
      %s1057 = int_to_ptr.vmem [resolvable:$true] %s1056
      %1062 = dma.vmem_to_hbm [thread:$0]  %s1057, 256, %s5, [#allocation5], 128, 128, 8
    $region45: #{tpu_custom_call.1} parent=1 // pred_fallthru
      _
    // Predicated region
    $region46: #{tpu_custom_call.1} parent=1 // pred_check
      _
    $region47: #{tpu_custom_call.1} parent=1 // pred_check_branch
      %1064 = sbr.rel (0) target = $region49
    $region48: #{tpu_custom_call.1} parent=1 // pred_region
      %1065 = dma.done [#allocation5], 256
    $region49: #{tpu_custom_call.1} parent=1 // pred_fallthru
      _
    %1066 = vsyncpa [#allocation4], 1
    %1067 = vsyncpa [#allocation7], 1
    %1068 = vsyncpa [#allocation5], 1

</llo_original>
